<compile_context>
chip_gen: v5e
topology: v5e:2x2
jax: 0.10.0
libtpu: 0.0.40
codegen_flags: <defaults>
</compile_context>

<pallas_src>
import functools
import math

import jax
import jax.numpy as jnp
from jax.experimental import pallas as pl
from jax.experimental.pallas import tpu as pltpu


def _round_up(n, m):
    return ((n + m - 1) // m) * m


def _elu(h):
    # ELU(alpha=1) without generating inf for large positive inputs.
    return jnp.where(h > 0, h, jnp.exp(jnp.minimum(h, 0.0)) - 1.0)


def _grn_kernel(x_ref, *rest, hid_p, out_p, out_dim, eps, has_context):
    if has_context:
        cw_ref, wsx_ref, wfwd_ref, wfg_ref, b_ref, o_ref = rest
    else:
        wsx_ref, wfwd_ref, wfg_ref, b_ref, o_ref = rest
        cw_ref = None

    # Packed biases / LN params (f32, one DMA). Rows:
    #   0: [b_skip | b_x]   1: b_fwd   2: [b_f | b_g]   3: gamma   4: beta
    b = b_ref[...]
    b_sx = b[0:1, : out_p + hid_p]
    b_fwd = b[1:2, :hid_p]
    b_fg = b[2:3, : 2 * out_p]
    gamma = b[3:4, :out_p]
    beta = b[4:5, :out_p]

    x = x_ref[...]                                               # bf16 -> MXU

    # fc_skip and fc_x fused (shared LHS): one [tm, xd] x [xd, out_p + hid_p].
    sx = jnp.dot(x, wsx_ref[...], preferred_element_type=jnp.float32) + b_sx
    skip = sx[:, :out_p]                                         # [tm, out_p] f32
    h = sx[:, out_p:]                                            # [tm, hid_p] f32
    if has_context:
        h = h + cw_ref[...]                                      # [1, hid_p] bcast

    h = _elu(h)
    h = jnp.dot(h.astype(wfwd_ref.dtype), wfwd_ref[...],
                preferred_element_type=jnp.float32) + b_fwd

    # GLU: fc_forward | fc_gate fused into one matmul, then split halves.
    fg = jnp.dot(h.astype(wfg_ref.dtype), wfg_ref[...],
                 preferred_element_type=jnp.float32) + b_fg      # [tm, 2*out_p]
    fwd = fg[:, :out_p]
    gate = fg[:, out_p:]
    y = jax.nn.sigmoid(gate) * fwd + skip                        # [tm, out_p] f32

    # LayerNorm over the real out_dim lanes, single pass. Padded lanes of y are
    # exactly zero (zero-padded weight columns + bias/gamma/beta lanes), so the
    # sums need no mask.
    inv_d = 1.0 / out_dim
    mean = jnp.sum(y, axis=-1, keepdims=True) * inv_d
    var = jnp.sum(y * y, axis=-1, keepdims=True) * inv_d - mean * mean
    out = (y - mean) * jax.lax.rsqrt(var + eps) * gamma + beta

    o_ref[...] = out.astype(o_ref.dtype)


def _pick_vmem_limit_bytes():
    cap = None
    try:
        cap = getattr(pltpu.get_tpu_info(), "vmem_capacity_bytes", None)
    except Exception:
        cap = None
    if not cap:
        cap = 64 * 1024 * 1024                     # conservative (v7x per-TC)
    return int(min(cap * 3 // 4, 112 * 1024 * 1024))


def gated_resnet(x, params, c=None, *, max_tile_rows=512, eps=1e-5,
                 compute_dtype=jnp.bfloat16):
    """x: [batch, *, x_dim]; c: [batch, 1, c_dim] or None -> [batch, *, out_dim]."""
    lead = x.shape[:-1]
    x_dim = x.shape[-1]
    hid_dim = params["wx"].shape[1]
    out_dim = params["wskip"].shape[1]
    has_context = c is not None
    if has_context != ("wc" in params):
        raise ValueError("GatedResNet module is created wrong for c_dim")

    hp = _round_up(hid_dim, 128)
    op = _round_up(out_dim, 128)

    # Row layout: keep the batch axis when a per-batch context is supplied (so
    # the tiny c @ Wc vector is indexed per grid step); otherwise flatten all
    # leading dims into one row axis. No host-side row padding or broadcast.
    if has_context:
        B = x.shape[0]
        R = math.prod(x.shape[1:-1])
    else:
        B = 1
        R = math.prod(lead) if lead else 1
    x3 = x.reshape(B, R, x_dim).astype(compute_dtype)

    if R <= max_tile_rows:
        tile_rows = R                              # single block (== full dim)
    else:
        tile_rows = max_tile_rows                  # multiple of 16 (bf16 sublanes)
    grid = (B, pl.cdiv(R, tile_rows))

    def pad2(a, r, cl):
        return jnp.pad(a, ((0, r - a.shape[0]), (0, cl - a.shape[1])))

    # Weights: bf16, lane-dense (zero-padded), fused pairs.
    wsx = jnp.concatenate([pad2(params["wskip"], x_dim, op),
                           pad2(params["wx"], x_dim, hp)],
                          axis=1).astype(compute_dtype)          # [xd, op+hp]
    wfwd = pad2(params["wfwd"], hp, hp).astype(compute_dtype)    # [hp, hp]
    wfg = jnp.concatenate([pad2(params["wf"], hp, op),
                           pad2(params["wg"], hp, op)],
                          axis=1).astype(compute_dtype)          # [hp, 2*op]

    # All biases + LayerNorm params packed into one (8, W) f32 block (one DMA).
    W = max(op + hp, 2 * op)
    pad1 = lambda v, w: jnp.pad(v.astype(jnp.float32), (0, w - v.shape[0]))
    rows = [
        jnp.concatenate([pad1(params["bskip"], op), pad1(params["bx"], hp)]),
        pad1(params["bfwd"], hp),
        jnp.concatenate([pad1(params["bf"], op), pad1(params["bg"], op)]),
        pad1(params["gamma"], op),
        pad1(params["beta"], op),
    ]
    bias_pack = jnp.stack([pad1(r, W) for r in rows]
                          + [jnp.zeros((W,), jnp.float32)] * 3, axis=0)   # (8, W)

    args = [x3]
    in_specs = [pl.BlockSpec((None, tile_rows, x_dim), lambda b, i: (b, i, 0))]
    if has_context:
        # c @ Wc precomputed once in XLA (tiny, f32), broadcast-added in-kernel.
        c2 = c.reshape(B, -1).astype(jnp.float32)
        cw = c2 @ params["wc"].astype(jnp.float32)               # [B, hid_dim]
        cw = jnp.pad(cw, ((0, 0), (0, hp - hid_dim))).reshape(B, 1, hp)
        args.append(cw)
        in_specs.append(pl.BlockSpec((None, 1, hp), lambda b, i: (b, 0, 0)))
    args += [wsx, wfwd, wfg, bias_pack]
    in_specs += [
        pl.BlockSpec((x_dim, op + hp), lambda b, i: (0, 0)),
        pl.BlockSpec((hp, hp), lambda b, i: (0, 0)),
        pl.BlockSpec((hp, 2 * op), lambda b, i: (0, 0)),
        pl.BlockSpec((8, W), lambda b, i: (0, 0)),
    ]

    kernel = functools.partial(_grn_kernel, hid_p=hp, out_p=op,
                               out_dim=out_dim, eps=eps, has_context=has_context)

    out = pl.pallas_call(
        kernel,
        out_shape=jax.ShapeDtypeStruct((B, R, op), x.dtype),
        grid_spec=pltpu.PrefetchScalarGridSpec(
            num_scalar_prefetch=0,
            grid=grid,
            in_specs=in_specs,
            out_specs=pl.BlockSpec((None, tile_rows, op), lambda b, i: (b, i, 0)),
        ),
        compiler_params=pltpu.CompilerParams(
            dimension_semantics=("parallel", "parallel"),
            vmem_limit_bytes=_pick_vmem_limit_bytes(),
        ),
    )(*args)

    out = out.reshape(*lead, op)
    if op != out_dim:
        out = out[..., :out_dim]
    return out


def init_params(key, x_dim, hid_dim, out_dim, c_dim=None):
    """Deterministic init mirroring nn.Linear / nn.LayerNorm shapes.

    Weights are stored pre-transposed as [in_dim, out_dim] so the kernel does
    x @ W (equivalent to PyTorch's x @ W_torch.T).
    """
    ks = jax.random.split(key, 12)

    def linear(kw, kb, fan_in, fan_out):
        bound = 1.0 / math.sqrt(fan_in)
        w = jax.random.uniform(kw, (fan_in, fan_out), jnp.float32, -bound, bound)
        b = jax.random.uniform(kb, (fan_out,), jnp.float32, -bound, bound)
        return w, b

    wskip, bskip = linear(ks[0], ks[1], x_dim, out_dim)
    wx, bx = linear(ks[2], ks[3], x_dim, hid_dim)
    wfwd, bfwd = linear(ks[4], ks[5], hid_dim, hid_dim)
    wf, bf = linear(ks[6], ks[7], hid_dim, out_dim)
    wg, bg = linear(ks[8], ks[9], hid_dim, out_dim)
    params = {
        "wskip": wskip, "bskip": bskip,
        "wx": wx, "bx": bx,
        "wfwd": wfwd, "bfwd": bfwd,
        "wf": wf, "bf": bf,
        "wg": wg, "bg": bg,
        "gamma": jnp.ones((out_dim,), jnp.float32),   # nn.LayerNorm weight init
        "beta": jnp.zeros((out_dim,), jnp.float32),   # nn.LayerNorm bias init
    }
    if c_dim is not None:
        bound = 1.0 / math.sqrt(c_dim)
        params["wc"] = jax.random.uniform(ks[10], (c_dim, hid_dim), jnp.float32,
                                          -bound, bound)   # fc_c has no bias
    return params


def reference(x, params, c=None, eps=1e-5, compute_dtype=jnp.float32):
    """Pure-JAX GRN. compute_dtype=bf16 mirrors the kernel's MXU operand dtype."""
    def mm(a, w):
        return jnp.dot(a.astype(compute_dtype), w.astype(compute_dtype),
                       preferred_element_type=jnp.float32)

    skip = mm(x, params["wskip"]) + params["bskip"]
    h = mm(x, params["wx"]) + params["bx"]
    if c is not None:
        h = h + c.astype(jnp.float32) @ params["wc"].astype(jnp.float32)
    h = _elu(h)
    h = mm(h, params["wfwd"]) + params["bfwd"]
    fwd = mm(h, params["wf"]) + params["bf"]
    gate = jax.nn.sigmoid(mm(h, params["wg"]) + params["bg"])
    y = gate * fwd + skip
    mean = jnp.mean(y, -1, keepdims=True)
    var = jnp.mean((y - mean) ** 2, -1, keepdims=True)
    return (y - mean) * jax.lax.rsqrt(var + eps) * params["gamma"] + params["beta"]


if __name__ == "__main__":
    batch, seq, x_dim, hid_dim, c_dim, out_dim = 2, 8, 32, 32, 16, 32

    key = jax.random.PRNGKey(0)
    kx, kc, kp, kp2 = jax.random.split(key, 4)
    x = jax.random.normal(kx, (batch, seq, x_dim), jnp.float32)
    c = jax.random.normal(kc, (batch, 1, c_dim), jnp.float32)
    params_c = init_params(kp, x_dim, hid_dim, out_dim, c_dim=c_dim)
    params_nc = init_params(kp2, x_dim, hid_dim, out_dim, c_dim=None)

    # Exercise both the context and no-context branches of the kernel.
    for params, ctx in ((params_c, c), (params_nc, None)):
        out = gated_resnet(x, params, c=ctx)
        out = jax.block_until_ready(out)
        assert out.shape == (batch, seq, out_dim)

        ref_match = reference(x, params, c=ctx, compute_dtype=jnp.bfloat16)
        ref_exact = reference(x, params, c=ctx, compute_dtype=jnp.float32)
        err_match = float(jnp.max(jnp.abs(out - ref_match)))
        err_exact = float(jnp.max(jnp.abs(out - ref_exact)))
        assert jnp.allclose(out, ref_match, atol=5e-3, rtol=5e-3), (
            f"mismatch vs bf16-matched reference, max abs err {err_match}")
        assert jnp.allclose(out, ref_exact, atol=1e-1, rtol=1e-1), (
            f"mismatch vs f32 reference, max abs err {err_exact}")

    print("KERNEL_OK")
</pallas_src>

<mosaic_0001>
module attributes {stable_mosaic.version = 11 : i64} {
  func.func @_grn_kernel(%arg0: i32, %arg1: i32, %arg2: memref<1x8x32xbf16, #tpu.memory_space<vmem>>, %arg3: memref<1x1x128xf32, #tpu.memory_space<vmem>>, %arg4: memref<32x256xbf16, #tpu.memory_space<vmem>>, %arg5: memref<128x128xbf16, #tpu.memory_space<vmem>>, %arg6: memref<128x256xbf16, #tpu.memory_space<vmem>>, %arg7: memref<8x256xf32, #tpu.memory_space<vmem>>, %arg8: memref<1x8x128xf32, #tpu.memory_space<vmem>>) attributes {dimension_semantics = [#tpu.dimension_semantics<parallel>, #tpu.dimension_semantics<parallel>], iteration_bounds = array<i64: 2, 1>, scalar_prefetch = 0 : i64, scratch_operands = 0 : i64, tpu.core_type = #tpu.core_type<tc>, window_params = [{transform_indices = @transform_0, window_bounds = array<i64: 1, 8, 32>}, {transform_indices = @transform_1, window_bounds = array<i64: 1, 1, 128>}, {pipeline_mode = #tpu.pipeline_mode<synchronous>, transform_indices = @transform_2, window_bounds = array<i64: 32, 256>}, {pipeline_mode = #tpu.pipeline_mode<synchronous>, transform_indices = @transform_3, window_bounds = array<i64: 128, 128>}, {pipeline_mode = #tpu.pipeline_mode<synchronous>, transform_indices = @transform_4, window_bounds = array<i64: 128, 256>}, {pipeline_mode = #tpu.pipeline_mode<synchronous>, transform_indices = @transform_5, window_bounds = array<i64: 8, 256>}, {transform_indices = @transform_6, window_bounds = array<i64: 1, 8, 128>}]} {
    %c0 = arith.constant 0 : index
    %c0_0 = arith.constant 0 : index
    %0 = vector.load %arg7[%c0, %c0_0] : memref<8x256xf32, #tpu.memory_space<vmem>>, vector<8x256xf32>
    %1 = vector.extract_strided_slice %0 {offsets = [0, 0], sizes = [1, 256], strides = [1, 1]} : vector<8x256xf32> to vector<1x256xf32>
    %2 = vector.extract_strided_slice %0 {offsets = [1, 0], sizes = [1, 128], strides = [1, 1]} : vector<8x256xf32> to vector<1x128xf32>
    %3 = vector.extract_strided_slice %0 {offsets = [2, 0], sizes = [1, 256], strides = [1, 1]} : vector<8x256xf32> to vector<1x256xf32>
    %4 = vector.extract_strided_slice %0 {offsets = [3, 0], sizes = [1, 128], strides = [1, 1]} : vector<8x256xf32> to vector<1x128xf32>
    %5 = vector.extract_strided_slice %0 {offsets = [4, 0], sizes = [1, 128], strides = [1, 1]} : vector<8x256xf32> to vector<1x128xf32>
    %c0_1 = arith.constant 0 : index
    %c0_2 = arith.constant 0 : index
    %c0_3 = arith.constant 0 : index
    %6 = vector.load %arg2[%c0_1, %c0_2, %c0_3] : memref<1x8x32xbf16, #tpu.memory_space<vmem>>, vector<1x8x32xbf16>
    %7 = vector.shape_cast %6 : vector<1x8x32xbf16> to vector<8x32xbf16>
    %c0_4 = arith.constant 0 : index
    %c0_5 = arith.constant 0 : index
    %8 = vector.load %arg4[%c0_4, %c0_5] : memref<32x256xbf16, #tpu.memory_space<vmem>>, vector<32x256xbf16>
    %cst = arith.constant dense<0.000000e+00> : vector<8x256xf32>
    %9 = tpu.matmul %7, %8, %cst {dimension_numbers = #tpu.dot_dimension_numbers<[1], [0], [0], [1], [0, 0, 1, 1], [], []>} : vector<8x32xbf16>, vector<32x256xbf16>, vector<8x256xf32> -> vector<8x256xf32>
    %10 = vector.broadcast %1 : vector<1x256xf32> to vector<8x256xf32>
    %11 = arith.addf %9, %10 : vector<8x256xf32>
    %12 = vector.extract_strided_slice %11 {offsets = [0, 0], sizes = [8, 128], strides = [1, 1]} : vector<8x256xf32> to vector<8x128xf32>
    %13 = vector.extract_strided_slice %11 {offsets = [0, 128], sizes = [8, 128], strides = [1, 1]} : vector<8x256xf32> to vector<8x128xf32>
    %c0_6 = arith.constant 0 : index
    %c0_7 = arith.constant 0 : index
    %c0_8 = arith.constant 0 : index
    %14 = vector.load %arg3[%c0_6, %c0_7, %c0_8] : memref<1x1x128xf32, #tpu.memory_space<vmem>>, vector<1x1x128xf32>
    %15 = vector.shape_cast %14 : vector<1x1x128xf32> to vector<1x128xf32>
    %16 = vector.broadcast %15 : vector<1x128xf32> to vector<8x128xf32>
    %17 = arith.addf %13, %16 : vector<8x128xf32>
    %cst_9 = arith.constant 0.000000e+00 : f32
    %18 = vector.broadcast %cst_9 : f32 to vector<8x128xf32>
    %19 = arith.cmpf ogt, %17, %18 : vector<8x128xf32>
    %cst_10 = arith.constant 0.000000e+00 : f32
    %20 = vector.broadcast %cst_10 : f32 to vector<8x128xf32>
    %21 = arith.minimumf %17, %20 : vector<8x128xf32>
    %22 = math.exp %21 : vector<8x128xf32>
    %cst_11 = arith.constant 1.000000e+00 : f32
    %23 = vector.broadcast %cst_11 : f32 to vector<8x128xf32>
    %24 = arith.subf %22, %23 : vector<8x128xf32>
    %25 = arith.select %19, %17, %24 : vector<8x128xi1>, vector<8x128xf32>
    %26 = arith.truncf %25 : vector<8x128xf32> to vector<8x128xbf16>
    %c0_12 = arith.constant 0 : index
    %c0_13 = arith.constant 0 : index
    %27 = vector.load %arg5[%c0_12, %c0_13] : memref<128x128xbf16, #tpu.memory_space<vmem>>, vector<128x128xbf16>
    %cst_14 = arith.constant dense<0.000000e+00> : vector<8x128xf32>
    %28 = tpu.matmul %26, %27, %cst_14 {dimension_numbers = #tpu.dot_dimension_numbers<[1], [0], [0], [1], [0, 0, 1, 1], [], []>} : vector<8x128xbf16>, vector<128x128xbf16>, vector<8x128xf32> -> vector<8x128xf32>
    %29 = vector.broadcast %2 : vector<1x128xf32> to vector<8x128xf32>
    %30 = arith.addf %28, %29 : vector<8x128xf32>
    %31 = arith.truncf %30 : vector<8x128xf32> to vector<8x128xbf16>
    %c0_15 = arith.constant 0 : index
    %c0_16 = arith.constant 0 : index
    %32 = vector.load %arg6[%c0_15, %c0_16] : memref<128x256xbf16, #tpu.memory_space<vmem>>, vector<128x256xbf16>
    %cst_17 = arith.constant dense<0.000000e+00> : vector<8x256xf32>
    %33 = tpu.matmul %31, %32, %cst_17 {dimension_numbers = #tpu.dot_dimension_numbers<[1], [0], [0], [1], [0, 0, 1, 1], [], []>} : vector<8x128xbf16>, vector<128x256xbf16>, vector<8x256xf32> -> vector<8x256xf32>
    %34 = vector.broadcast %3 : vector<1x256xf32> to vector<8x256xf32>
    %35 = arith.addf %33, %34 : vector<8x256xf32>
    %36 = vector.extract_strided_slice %35 {offsets = [0, 0], sizes = [8, 128], strides = [1, 1]} : vector<8x256xf32> to vector<8x128xf32>
    %37 = vector.extract_strided_slice %35 {offsets = [0, 128], sizes = [8, 128], strides = [1, 1]} : vector<8x256xf32> to vector<8x128xf32>
    %38 = arith.negf %37 : vector<8x128xf32>
    %39 = math.exp %38 : vector<8x128xf32>
    %cst_18 = arith.constant 1.000000e+00 : f32
    %40 = vector.broadcast %cst_18 : f32 to vector<8x128xf32>
    %41 = arith.addf %40, %39 : vector<8x128xf32>
    %42 = arith.divf %40, %41 : vector<8x128xf32>
    %43 = arith.mulf %42, %36 : vector<8x128xf32>
    %44 = arith.addf %43, %12 : vector<8x128xf32>
    %cst_19 = arith.constant dense<0.000000e+00> : vector<8xf32>
    %45 = vector.multi_reduction <add>, %44, %cst_19 [1] : vector<8x128xf32> to vector<8xf32>
    %46 = vector.shape_cast %45 : vector<8xf32> to vector<8x1xf32>
    %cst_20 = arith.constant 3.125000e-02 : f32
    %47 = vector.broadcast %cst_20 : f32 to vector<8x1xf32>
    %48 = arith.mulf %46, %47 : vector<8x1xf32>
    %49 = arith.mulf %44, %44 : vector<8x128xf32>
    %cst_21 = arith.constant dense<0.000000e+00> : vector<8xf32>
    %50 = vector.multi_reduction <add>, %49, %cst_21 [1] : vector<8x128xf32> to vector<8xf32>
    %51 = vector.shape_cast %50 : vector<8xf32> to vector<8x1xf32>
    %cst_22 = arith.constant 3.125000e-02 : f32
    %52 = vector.broadcast %cst_22 : f32 to vector<8x1xf32>
    %53 = arith.mulf %51, %52 : vector<8x1xf32>
    %54 = arith.mulf %48, %48 : vector<8x1xf32>
    %55 = arith.subf %53, %54 : vector<8x1xf32>
    %56 = vector.broadcast %48 : vector<8x1xf32> to vector<8x128xf32>
    %57 = arith.subf %44, %56 : vector<8x128xf32>
    %cst_23 = arith.constant 9.99999974E-6 : f32
    %58 = vector.broadcast %cst_23 : f32 to vector<8x1xf32>
    %59 = arith.addf %55, %58 : vector<8x1xf32>
    %60 = math.rsqrt %59 : vector<8x1xf32>
    %61 = vector.broadcast %60 : vector<8x1xf32> to vector<8x128xf32>
    %62 = arith.mulf %57, %61 : vector<8x128xf32>
    %63 = vector.broadcast %4 : vector<1x128xf32> to vector<8x128xf32>
    %64 = arith.mulf %62, %63 : vector<8x128xf32>
    %65 = vector.broadcast %5 : vector<1x128xf32> to vector<8x128xf32>
    %66 = arith.addf %64, %65 : vector<8x128xf32>
    %c0_24 = arith.constant 0 : index
    %c0_25 = arith.constant 0 : index
    %c0_26 = arith.constant 0 : index
    %67 = vector.load %arg8[%c0_24, %c0_25, %c0_26] : memref<1x8x128xf32, #tpu.memory_space<vmem>>, vector<1x8x128xf32>
    %68 = vector.shape_cast %67 : vector<1x8x128xf32> to vector<8x128xf32>
    %69 = vector.shape_cast %66 : vector<8x128xf32> to vector<1x8x128xf32>
    tpu.vector_store %arg8[%c0_24, %c0_25, %c0_26], %69 {strides = array<i32>} : memref<1x8x128xf32, #tpu.memory_space<vmem>>, vector<1x8x128xf32>,
    return
  }
  func.func @transform_0(%arg0: i32, %arg1: i32) -> (i32, i32, i32) {
    %c0_i32 = arith.constant 0 : i32
    %c0_i32_0 = arith.constant 0 : i32
    return %arg0, %arg1, %c0_i32 : i32, i32, i32
  }
  func.func @transform_1(%arg0: i32, %arg1: i32) -> (i32, i32, i32) {
    %c0_i32 = arith.constant 0 : i32
    %c0_i32_0 = arith.constant 0 : i32
    %c0_i32_1 = arith.constant 0 : i32
    return %arg0, %c0_i32, %c0_i32_0 : i32, i32, i32
  }
  func.func @transform_2(%arg0: i32, %arg1: i32) -> (i32, i32) {
    %c0_i32 = arith.constant 0 : i32
    %c0_i32_0 = arith.constant 0 : i32
    %c0_i32_1 = arith.constant 0 : i32
    return %c0_i32, %c0_i32_0 : i32, i32
  }
  func.func @transform_3(%arg0: i32, %arg1: i32) -> (i32, i32) {
    %c0_i32 = arith.constant 0 : i32
    %c0_i32_0 = arith.constant 0 : i32
    %c0_i32_1 = arith.constant 0 : i32
    return %c0_i32, %c0_i32_0 : i32, i32
  }
  func.func @transform_4(%arg0: i32, %arg1: i32) -> (i32, i32) {
    %c0_i32 = arith.constant 0 : i32
    %c0_i32_0 = arith.constant 0 : i32
    %c0_i32_1 = arith.constant 0 : i32
    return %c0_i32, %c0_i32_0 : i32, i32
  }
  func.func @transform_5(%arg0: i32, %arg1: i32) -> (i32, i32) {
    %c0_i32 = arith.constant 0 : i32
    %c0_i32_0 = arith.constant 0 : i32
    %c0_i32_1 = arith.constant 0 : i32
    return %c0_i32, %c0_i32_0 : i32, i32
  }
  func.func @transform_6(%arg0: i32, %arg1: i32) -> (i32, i32, i32) {
    %c0_i32 = arith.constant 0 : i32
    %c0_i32_0 = arith.constant 0 : i32
    return %arg0, %arg1, %c0_i32 : i32, i32, i32
  }
}

</mosaic_0001>

<llo_original>
// kernel: tpu_custom_call.1
$region0: #{tpu_custom_call.1}
  #allocation0 [shape = 'u32[]', space=smem, size = 0x4, offset = 0x4, fixed_abs, tag = 'smem constant byte address 0x4 - core index']
  #allocation1 [shape = 'u32[72,128]{1,0:T(1,128)}', space=vmem, size = 0x9000, scoped, tag = 'internal scratch']
  %s0 = inlined_call_operand.hbm [shape: bf16[2,8,32], index: 0, kind: input, shape index: {}]
  %s1 = inlined_call_operand.hbm [shape: f32[2,1,128], index: 1, kind: input, shape index: {}]
  %s2 = inlined_call_operand.hbm [shape: bf16[32,256], index: 2, kind: input, shape index: {}]
  %s3 = inlined_call_operand.hbm [shape: bf16[128,128], index: 3, kind: input, shape index: {}]
  %s4 = inlined_call_operand.hbm [shape: bf16[128,256], index: 4, kind: input, shape index: {}]
  %s5 = inlined_call_operand.hbm [shape: f32[8,256], index: 5, kind: input, shape index: {}]
  %s6 = inlined_call_operand.hbm [shape: f32[2,8,128], index: 6, kind: output, shape index: {}]
  %s7 = sld [smem:[#allocation0]]
  $region81: #{tpu_custom_call.1} parent=0
    _
  %s9 = ssub.s32 1, %s7
  %s10 = scalar_select 0, %s9, %s7
  $region1: #{tpu_custom_call.1} parent=0
    #allocation2 [shape = 'u8[4096]{0}', space=vmem, size = 0x1000, scoped, tag = 'input window, operand 0']
    #allocation3 [shape = 's32[2]{0}', space=sflag, size = 0x8, scoped, tag = 'scoped memory for tpu_custom_call.1']
    #allocation4 [shape = 's32[2]{0}', space=sflag, size = 0x8, scoped, tag = 'scoped memory for tpu_custom_call.1']
    #allocation5 [shape = 'u8[1024]{0}', space=vmem, size = 0x400, scoped, tag = 'input window, operand 1']
    #allocation6 [shape = 's32[2]{0}', space=sflag, size = 0x8, scoped, tag = 'scoped memory for tpu_custom_call.1']
    #allocation7 [shape = 'u8[16384]{0}', space=vmem, size = 0x4000, scoped, tag = 'input window, operand 2, single buffered']
    #allocation8 [shape = 'u8[32768]{0}', space=vmem, size = 0x8000, scoped, tag = 'input window, operand 3, single buffered']
    #allocation9 [shape = 's32[1]{0}', space=sflag, size = 0x4, scoped, tag = 'scoped memory for tpu_custom_call.1']
    #allocation10 [shape = 'u8[65536]{0}', space=vmem, size = 0x10000, scoped, tag = 'input window, operand 4, single buffered']
    #allocation11 [shape = 'u8[8192]{0}', space=vmem, size = 0x2000, scoped, tag = 'input window, operand 5, single buffered']
    #allocation12 [shape = 's32[1]{0}', space=sflag, size = 0x4, scoped, tag = 'scoped memory for tpu_custom_call.1']
    #allocation13 [shape = 'u8[8192]{0}', space=vmem, size = 0x2000, scoped, tag = 'output window, operand 0']
    %11 = vsyncpa [#allocation3], 0
    %s12 = scalar_lea.sflag [#allocation3], 1
    %13 = vsyncpa %s12, 0
    %14 = vsyncpa [#allocation6], 0
    %s15 = scalar_lea.sflag [#allocation6], 1
    %16 = vsyncpa %s15, 0
    %17 = vsyncpa [#allocation9], 0
    %18 = vsyncpa [#allocation12], 0
    %19 = vsyncpa [#allocation4], 0
    %s20 = scalar_lea.sflag [#allocation4], 1
    %21 = vsyncpa %s20, 0
    loop: start=0, step=1, limit=4
    $region2: #{tpu_custom_call.1} parent=1 // loop_pre_header
      _
    $region3: #{tpu_custom_call.1} parent=1 // loop_header
      %s23 = sphi 0, %s27
      %p24 = scmp.ge.s32.totalorder %s23, 4
      %s30 = sphi 0, %s42
      %s31 = sphi 0, %s38
      %s32 = sphi 0, %s30
      %s33 = sphi 0, %s31
      %s34 = sphi 0, %s32
      %s35 = sphi 0, %s33
      %s47 = sphi 0, %s49
      %s50 = sphi 0, %s47
      %s51 = sphi 0, %s50
      %s67 = sphi 0, %s51
      %s73 = sphi 0, %s75
      %s76 = sphi 0, %s73
      %s77 = sphi 0, %s76
      %s93 = sphi 0, %s77
      %s97 = sphi 0, %s97
      %s99 = sphi 0, %s97
      %s100 = sphi 0, %s99
      %s114 = sphi 0, %s100
      %s118 = sphi 0, %s118
      %s120 = sphi 0, %s118
      %s121 = sphi 0, %s120
      %s135 = sphi 0, %s121
      %s139 = sphi 0, %s139
      %s141 = sphi 0, %s139
      %s142 = sphi 0, %s141
      %s156 = sphi 0, %s142
      %s160 = sphi 0, %s160
      %s162 = sphi 0, %s160
      %s163 = sphi 0, %s162
      %s177 = sphi 0, %s163
      %s185 = sphi 0, %s187
      %s188 = sphi 0, %s185
      %s189 = sphi 0, %s188
      %s205 = sphi 0, %s189
    $region4: #{tpu_custom_call.1} parent=1 // loop_header_branch
      %26 = sbr.rel (%p24) target = $region8
    $region5: #{tpu_custom_call.1} parent=1 // loop_body
      %s28 = ssub.s32 %s23, 1
      %s29 = ssub.s32 %s23, 2
      %s36 = sadd.s32 1, %s31
      %p37 = scmp.ge.s32.totalorder %s36, 1
      %s38 = scalar_select %p37, 0, %s36
      %s39 = sadd.s32 1, %s30
      %s40 = scalar_select %p37, %s39, %s30
      %p41 = scmp.ge.s32.totalorder %s40, 2
      %s42 = scalar_select %p41, 0, %s40
      %s43 = ssub.s32 %s30, %s42
      %s44 = ssub.s32 %s31, %s38
      %s45 = sor.u32 %s43, %s44
      %p46 = scmp.eq.s32.totalorder %s45, 0
      %s48 = sadd.s32 %s47, 1
      %s49 = scalar_select %p46, %s47, %s48
      %p52 = pneg %p46
      %p53 = scmp.eq.s32.totalorder %s23, 1
      %p54 = por %p52, %p53
      %p55 = scmp.ne.s32.totalorder %s47, %s50
      %p56 = scmp.eq.s32.totalorder %s23, 0
      %p57 = por %p55, %p56
      %p58 = scmp.ne.s32.totalorder %s47, %s50
      %p59 = scmp.eq.s32.totalorder %s28, 1
      %p60 = por %p58, %p59
      %p61 = scmp.ne.s32.totalorder %s50, %s51
      %p62 = scmp.eq.s32.totalorder %s28, 0
      %p63 = por %p61, %p62
      %p64 = scmp.ne.s32.totalorder %s50, %s51
      %p65 = scmp.eq.s32.totalorder %s29, 1
      %p66 = por %p64, %p65
      %p68 = scmp.ne.s32.totalorder %s51, %s67
      %p69 = scmp.eq.s32.totalorder %s29, 0
      %p70 = por %p68, %p69
      %s71 = ssub.s32 %s30, %s42
      %p72 = scmp.eq.s32.totalorder %s71, 0
      %s74 = sadd.s32 %s73, 1
      %s75 = scalar_select %p72, %s73, %s74
      %p78 = pneg %p72
      %p79 = scmp.eq.s32.totalorder %s23, 1
      %p80 = por %p78, %p79
      %p81 = scmp.ne.s32.totalorder %s73, %s76
      %p82 = scmp.eq.s32.totalorder %s23, 0
      %p83 = por %p81, %p82
      %p84 = scmp.ne.s32.totalorder %s73, %s76
      %p85 = scmp.eq.s32.totalorder %s28, 1
      %p86 = por %p84, %p85
      %p87 = scmp.ne.s32.totalorder %s76, %s77
      %p88 = scmp.eq.s32.totalorder %s28, 0
      %p89 = por %p87, %p88
      %p90 = scmp.ne.s32.totalorder %s76, %s77
      %p91 = scmp.eq.s32.totalorder %s29, 1
      %p92 = por %p90, %p91
      %p94 = scmp.ne.s32.totalorder %s77, %s93
      %p95 = scmp.eq.s32.totalorder %s29, 0
      %p96 = por %p94, %p95
      %s98 = sadd.s32 %s97, 1
      %p101 = scmp.eq.s32.totalorder %s23, 1
      %p102 = scmp.ne.s32.totalorder %s97, %s99
      %p103 = scmp.eq.s32.totalorder %s23, 0
      %p104 = por %p102, %p103
      %p105 = scmp.ne.s32.totalorder %s97, %s99
      %p106 = scmp.eq.s32.totalorder %s28, 1
      %p107 = por %p105, %p106
      %p108 = scmp.ne.s32.totalorder %s99, %s100
      %p109 = scmp.eq.s32.totalorder %s28, 0
      %p110 = por %p108, %p109
      %p111 = scmp.ne.s32.totalorder %s99, %s100
      %p112 = scmp.eq.s32.totalorder %s29, 1
      %p113 = por %p111, %p112
      %p115 = scmp.ne.s32.totalorder %s100, %s114
      %p116 = scmp.eq.s32.totalorder %s29, 0
      %p117 = por %p115, %p116
      %s119 = sadd.s32 %s118, 1
      %p122 = scmp.eq.s32.totalorder %s23, 1
      %p123 = scmp.ne.s32.totalorder %s118, %s120
      %p124 = scmp.eq.s32.totalorder %s23, 0
      %p125 = por %p123, %p124
      %p126 = scmp.ne.s32.totalorder %s118, %s120
      %p127 = scmp.eq.s32.totalorder %s28, 1
      %p128 = por %p126, %p127
      %p129 = scmp.ne.s32.totalorder %s120, %s121
      %p130 = scmp.eq.s32.totalorder %s28, 0
      %p131 = por %p129, %p130
      %p132 = scmp.ne.s32.totalorder %s120, %s121
      %p133 = scmp.eq.s32.totalorder %s29, 1
      %p134 = por %p132, %p133
      %p136 = scmp.ne.s32.totalorder %s121, %s135
      %p137 = scmp.eq.s32.totalorder %s29, 0
      %p138 = por %p136, %p137
      %s140 = sadd.s32 %s139, 1
      %p143 = scmp.eq.s32.totalorder %s23, 1
      %p144 = scmp.ne.s32.totalorder %s139, %s141
      %p145 = scmp.eq.s32.totalorder %s23, 0
      %p146 = por %p144, %p145
      %p147 = scmp.ne.s32.totalorder %s139, %s141
      %p148 = scmp.eq.s32.totalorder %s28, 1
      %p149 = por %p147, %p148
      %p150 = scmp.ne.s32.totalorder %s141, %s142
      %p151 = scmp.eq.s32.totalorder %s28, 0
      %p152 = por %p150, %p151
      %p153 = scmp.ne.s32.totalorder %s141, %s142
      %p154 = scmp.eq.s32.totalorder %s29, 1
      %p155 = por %p153, %p154
      %p157 = scmp.ne.s32.totalorder %s142, %s156
      %p158 = scmp.eq.s32.totalorder %s29, 0
      %p159 = por %p157, %p158
      %s161 = sadd.s32 %s160, 1
      %p164 = scmp.eq.s32.totalorder %s23, 1
      %p165 = scmp.ne.s32.totalorder %s160, %s162
      %p166 = scmp.eq.s32.totalorder %s23, 0
      %p167 = por %p165, %p166
      %p168 = scmp.ne.s32.totalorder %s160, %s162
      %p169 = scmp.eq.s32.totalorder %s28, 1
      %p170 = por %p168, %p169
      %p171 = scmp.ne.s32.totalorder %s162, %s163
      %p172 = scmp.eq.s32.totalorder %s28, 0
      %p173 = por %p171, %p172
      %p174 = scmp.ne.s32.totalorder %s162, %s163
      %p175 = scmp.eq.s32.totalorder %s29, 1
      %p176 = por %p174, %p175
      %p178 = scmp.ne.s32.totalorder %s163, %s177
      %p179 = scmp.eq.s32.totalorder %s29, 0
      %p180 = por %p178, %p179
      %s181 = ssub.s32 %s30, %s42
      %s182 = ssub.s32 %s31, %s38
      %s183 = sor.u32 %s181, %s182
      %p184 = scmp.eq.s32.totalorder %s183, 0
      %s186 = sadd.s32 %s185, 1
      %s187 = scalar_select %p184, %s185, %s186
      %p190 = pneg %p184
      %p191 = scmp.eq.s32.totalorder %s23, 1
      %p192 = por %p190, %p191
      %p193 = scmp.ne.s32.totalorder %s185, %s188
      %p194 = scmp.eq.s32.totalorder %s23, 0
      %p195 = por %p193, %p194
      %p196 = scmp.ne.s32.totalorder %s185, %s188
      %p197 = scmp.eq.s32.totalorder %s28, 1
      %p198 = por %p196, %p197
      %p199 = scmp.ne.s32.totalorder %s188, %s189
      %p200 = scmp.eq.s32.totalorder %s28, 0
      %p201 = por %p199, %p200
      %p202 = scmp.ne.s32.totalorder %s188, %s189
      %p203 = scmp.eq.s32.totalorder %s29, 1
      %p204 = por %p202, %p203
      %p206 = scmp.ne.s32.totalorder %s189, %s205
      %p207 = scmp.eq.s32.totalorder %s29, 0
      %p208 = por %p206, %p207
      %p209 = scmp.le.s32.totalorder 1, %s23
      %p210 = scmp.lt.s32.totalorder %s23, 3
      %p211 = pnand %p209, %p210
      %p212 = pneg %p211
      // Predicated region
      $region9: #{tpu_custom_call.1} parent=5 // pred_check
        _
      $region10: #{tpu_custom_call.1} parent=5 // pred_check_branch
        %214 = sbr.rel (%p211) target = $region12
      $region11: #{tpu_custom_call.1} parent=5 // pred_region
        %s215 = ssub.s32 %s23, 1
        // Predicated region
        $region13: #{tpu_custom_call.1} parent=11 // pred_check
          %p216 = pneg %p110
        $region14: #{tpu_custom_call.1} parent=11 // pred_check_branch
          %218 = sbr.rel (%p216) target = $region16
        $region15: #{tpu_custom_call.1} parent=11 // pred_region
          %220 = vsyncadd [#allocation6], 0
          %s221 = sshll.u32 %s2, 4
          %s222 = int_to_ptr.hbm [resolvable:$true] %s221
          %s223 = sshll.u32 [#allocation7], 4
          %s224 = int_to_ptr.vmem [resolvable:$true] %s223
          %229 = dma.hbm_to_vmem [thread:$0]  %s222, 512, %s224, [#allocation6], 128, 128, 8
        $region16: #{tpu_custom_call.1} parent=11 // pred_fallthru
          _
        // Predicated region
        $region17: #{tpu_custom_call.1} parent=11 // pred_check
          %p230 = pneg %p131
        $region18: #{tpu_custom_call.1} parent=11 // pred_check_branch
          %232 = sbr.rel (%p230) target = $region20
        $region19: #{tpu_custom_call.1} parent=11 // pred_region
          %234 = vsyncadd [#allocation9], 0
          %s235 = sshll.u32 %s3, 4
          %s236 = int_to_ptr.hbm [resolvable:$true] %s235
          %s237 = sshll.u32 [#allocation8], 4
          %s238 = int_to_ptr.vmem [resolvable:$true] %s237
          %243 = dma.hbm_to_vmem [thread:$0]  %s236, 1024, %s238, [#allocation9], 64, 64, 4
        $region20: #{tpu_custom_call.1} parent=11 // pred_fallthru
          _
        // Predicated region
        $region21: #{tpu_custom_call.1} parent=11 // pred_check
          %p244 = pneg %p152
        $region22: #{tpu_custom_call.1} parent=11 // pred_check_branch
          %246 = sbr.rel (%p244) target = $region24
        $region23: #{tpu_custom_call.1} parent=11 // pred_region
          %248 = vsyncadd [#allocation9], 0
          %s249 = sshll.u32 %s4, 4
          %s250 = int_to_ptr.hbm [resolvable:$true] %s249
          %s251 = sshll.u32 [#allocation10], 4
          %s252 = int_to_ptr.vmem [resolvable:$true] %s251
          %257 = dma.hbm_to_vmem [thread:$0]  %s250, 2048, %s252, [#allocation9], 128, 128, 8
        $region24: #{tpu_custom_call.1} parent=11 // pred_fallthru
          _
        // Predicated region
        $region25: #{tpu_custom_call.1} parent=11 // pred_check
          %p258 = pneg %p173
        $region26: #{tpu_custom_call.1} parent=11 // pred_check_branch
          %260 = sbr.rel (%p258) target = $region28
        $region27: #{tpu_custom_call.1} parent=11 // pred_region
          %262 = vsyncadd [#allocation12], 0
          %s264 = sshll.u32 %s5, 4
          %s265 = int_to_ptr.hbm [resolvable:$true] %s264
          %s266 = sshll.u32 [#allocation11], 4
          %s267 = int_to_ptr.vmem [resolvable:$true] %s266
          %269 = dma.hbm_to_vmem [thread:$0]  %s265, 256, %s267, [#allocation12]
        $region28: #{tpu_custom_call.1} parent=11 // pred_fallthru
          _
      $region12: #{tpu_custom_call.1} parent=5 // pred_fallthru
        _
      %p270 = scmp.lt.s32.totalorder %s23, 2
      // Predicated region
      $region29: #{tpu_custom_call.1} parent=5 // pred_check
        %p271 = pneg %p270
      $region30: #{tpu_custom_call.1} parent=5 // pred_check_branch
        %273 = sbr.rel (%p271) target = $region32
      $region31: #{tpu_custom_call.1} parent=5 // pred_region
        // Predicated region
        $region33: #{tpu_custom_call.1} parent=31 // pred_check
          %p274 = pneg %p57
        $region34: #{tpu_custom_call.1} parent=31 // pred_check_branch
          %276 = sbr.rel (%p274) target = $region36
        $region35: #{tpu_custom_call.1} parent=31 // pred_region
          %s277 = sand.u32 %s47, 1
          %s278 = scalar_lea.sflag [#allocation3], %s277
          %s279 = sand.u32 %s47, 1
          %s280 = smul.addr %s279, 4
          %s281 = scalar_lea.vmem [#allocation2], %s280
          %283 = vsyncadd %s278, 0
          %s284 = sadd.s32 %s31, %s30
          %s285 = smul.addr %s284, 4
          %s286 = scalar_lea.hbm %s0, %s285
          %s288 = sshll.u32 %s286, 4
          %s289 = int_to_ptr.hbm [resolvable:$true] %s288
          %s290 = sshll.u32 %s281, 4
          %s291 = int_to_ptr.vmem [resolvable:$true] %s290
          %293 = dma.hbm_to_vmem [thread:$0]  %s289, 64, %s291, %s278
        $region36: #{tpu_custom_call.1} parent=31 // pred_fallthru
          _
        // Predicated region
        $region37: #{tpu_custom_call.1} parent=31 // pred_check
          %p294 = pneg %p83
        $region38: #{tpu_custom_call.1} parent=31 // pred_check_branch
          %296 = sbr.rel (%p294) target = $region40
        $region39: #{tpu_custom_call.1} parent=31 // pred_region
          %s297 = sand.u32 %s23, 1
          %s298 = scalar_lea.sflag [#allocation6], %s297
          %s299 = sand.u32 %s73, 1
          %s300 = scalar_lea.vmem [#allocation5], %s299
          %302 = vsyncadd %s298, 0
          %s303 = scalar_lea.hbm %s1, %s30
          %s305 = sshll.u32 %s303, 4
          %s306 = int_to_ptr.hbm [resolvable:$true] %s305
          %s307 = sshll.u32 %s300, 4
          %s308 = int_to_ptr.vmem [resolvable:$true] %s307
          %310 = dma.hbm_to_vmem [thread:$0]  %s306, 16, %s308, %s298
        $region40: #{tpu_custom_call.1} parent=31 // pred_fallthru
          _
      $region32: #{tpu_custom_call.1} parent=5 // pred_fallthru
        _
      %p311 = scmp.le.s32.totalorder 1, %s23
      %p312 = scmp.lt.s32.totalorder %s23, 3
      %p313 = pnand %p311, %p312
      %p314 = pneg %p313
      // Predicated region
      $region41: #{tpu_custom_call.1} parent=5 // pred_check
        _
      $region42: #{tpu_custom_call.1} parent=5 // pred_check_branch
        %316 = sbr.rel (%p313) target = $region44
      $region43: #{tpu_custom_call.1} parent=5 // pred_region
        %s317 = ssub.s32 %s23, 1
        %s318 = sand.u32 %s50, 1
        %s319 = scalar_lea.sflag [#allocation3], %s318
        %s320 = sand.u32 %s50, 1
        %s321 = smul.addr %s320, 4
        %s322 = scalar_lea.vmem [#allocation2], %s321
        // Predicated region
        $region45: #{tpu_custom_call.1} parent=43 // pred_check
          %p323 = pneg %p63
        $region46: #{tpu_custom_call.1} parent=43 // pred_check_branch
          %325 = sbr.rel (%p323) target = $region48
        $region47: #{tpu_custom_call.1} parent=43 // pred_region
          %327 = dma.done %s319, 64
        $region48: #{tpu_custom_call.1} parent=43 // pred_fallthru
          _
        %s328 = sand.u32 %s28, 1
        %s329 = scalar_lea.sflag [#allocation6], %s328
        %s330 = sand.u32 %s76, 1
        %s331 = scalar_lea.vmem [#allocation5], %s330
        // Predicated region
        $region49: #{tpu_custom_call.1} parent=43 // pred_check
          %p332 = pneg %p89
        $region50: #{tpu_custom_call.1} parent=43 // pred_check_branch
          %334 = sbr.rel (%p332) target = $region52
        $region51: #{tpu_custom_call.1} parent=43 // pred_region
          %336 = dma.done %s329, 16
        $region52: #{tpu_custom_call.1} parent=43 // pred_fallthru
          _
        // Predicated region
        $region53: #{tpu_custom_call.1} parent=43 // pred_check
          %p337 = pneg %p110
        $region54: #{tpu_custom_call.1} parent=43 // pred_check_branch
          %339 = sbr.rel (%p337) target = $region56
        $region55: #{tpu_custom_call.1} parent=43 // pred_region
          %341 = dma.done [#allocation6], 512
        $region56: #{tpu_custom_call.1} parent=43 // pred_fallthru
          _
        // Predicated region
        $region57: #{tpu_custom_call.1} parent=43 // pred_check
          %p342 = pneg %p131
        $region58: #{tpu_custom_call.1} parent=43 // pred_check_branch
          %344 = sbr.rel (%p342) target = $region60
        $region59: #{tpu_custom_call.1} parent=43 // pred_region
          %346 = dma.done [#allocation9], 1024
        $region60: #{tpu_custom_call.1} parent=43 // pred_fallthru
          _
        // Predicated region
        $region61: #{tpu_custom_call.1} parent=43 // pred_check
          %p347 = pneg %p152
        $region62: #{tpu_custom_call.1} parent=43 // pred_check_branch
          %349 = sbr.rel (%p347) target = $region64
        $region63: #{tpu_custom_call.1} parent=43 // pred_region
          %351 = dma.done [#allocation9], 2048
        $region64: #{tpu_custom_call.1} parent=43 // pred_fallthru
          _
        // Predicated region
        $region65: #{tpu_custom_call.1} parent=43 // pred_check
          %p352 = pneg %p173
        $region66: #{tpu_custom_call.1} parent=43 // pred_check_branch
          %354 = sbr.rel (%p352) target = $region68
        $region67: #{tpu_custom_call.1} parent=43 // pred_region
          %356 = dma.done [#allocation12], 256
        $region68: #{tpu_custom_call.1} parent=43 // pred_fallthru
          _
        %s357 = sand.u32 %s50, 1
        %s358 = scalar_lea.sflag [#allocation3], %s357
        %s359 = sand.u32 %s50, 1
        %s360 = smul.addr %s359, 4
        %s361 = scalar_lea.vmem [#allocation2], %s360
        %p362 = pneg %p63
        %p363 = pneg %p60
        %s364 = sand.u32 %s28, 1
        %s365 = scalar_lea.sflag [#allocation6], %s364
        %s366 = sand.u32 %s76, 1
        %s367 = scalar_lea.vmem [#allocation5], %s366
        %p368 = pneg %p89
        %p369 = pneg %p86
        %p370 = pneg %p110
        %p371 = pneg %p107
        %p372 = pneg %p131
        %p373 = pneg %p128
        %p374 = pneg %p152
        %p375 = pneg %p149
        %p376 = pneg %p173
        %p377 = pneg %p170
        %p378 = pneg %p201
        %p379 = pneg %p198
        %s380 = sand.u32 %s188, 1
        %s381 = scalar_lea.sflag [#allocation4], %s380
        %s382 = sand.u32 %s188, 1
        %s383 = smul.addr %s382, 8
        %s384 = scalar_lea.vmem [#allocation13], %s383
        %v386 = vld [vmem:[#allocation11] sm:$0xff]
        %v387 = vld [vmem:[#allocation11 + $0x8] sm:$0xff]
        %v388 = vld [vmem:[%s322] sm:$0xf]
        %v389 = vld [vmem:[#allocation7] sm:$0xff]
        %v390 = vld [vmem:[#allocation7 + $0x8] sm:$0xff]
        %v391 = vld [vmem:[#allocation7 + $0x10] sm:$0xff]
        %v392 = vld [vmem:[#allocation7 + $0x18] sm:$0xff]
        %v393 = vperm.slane %v386, 0
        %v394 = vperm.slane %v387, 0
        %v399 = vunpack.c.l.b16 %v389
        %v400 = vunpack.c.h.b16 %v389
        %v401 = vunpack.c.l.b16 %v390
        %v402 = vunpack.c.h.b16 %v390
        %v403 = vunpack.c.l.b16 %v391
        %v404 = vunpack.c.h.b16 %v391
        %v405 = vunpack.c.l.b16 %v392
        %v406 = vunpack.c.h.b16 %v392
        %v407 = vpack.c.b16 %v401, %v399
        %v408 = vpack.c.b16 %v402, %v400
        %v409 = vpack.c.b16 %v405, %v403
        %v410 = vpack.c.b16 %v406, %v404
        %vm415 = vcmask 261120
        %v417 = vsel %vm415, %v388, 0
        %419 = vmatpush.bf16.msra.mxu0 0
        %420 = vmatpush.bf16.msra.mxu0 0
        %421 = vmatpush.bf16.msra.mxu0 0
        %422 = vmatpush.bf16.msra.mxu0 0
        %423 = vmatpush.bf16.msra.mxu0 0
        %424 = vmatpush.bf16.msra.mxu0 0
        %425 = vmatpush.bf16.msra.mxu0 %v409
        %426 = vmatpush.bf16.msra.mxu0 %v407
        %427 = vmatmul.bf16.gmra.mxu0 %v417
        %v428 = vpop.f32.mrf.mxu0
        %v429 = vadd.f32 %v393, %v428
        %v430 = vpop.f32.mrf.mxu0
        %431 = vdwg.mxu0
        %432 = vmatpush.bf16.msra.mxu0 0
        %433 = vmatpush.bf16.msra.mxu0 0
        %434 = vmatpush.bf16.msra.mxu0 0
        %435 = vmatpush.bf16.msra.mxu0 0
        %436 = vmatpush.bf16.msra.mxu0 0
        %437 = vmatpush.bf16.msra.mxu0 0
        %438 = vmatpush.bf16.msra.mxu0 %v410
        %439 = vmatpush.bf16.msra.mxu0 %v408
        %440 = vmatmul.bf16.gmra.mxu0 %v417
        %v441 = vpop.f32.mrf.mxu0
        %v442 = vadd.f32 %v394, %v441
        %v443 = vpop.f32.mrf.mxu0
        %444 = vdwg.mxu0
        %v445 = vld [vmem:[%s331] sm:$0x1]
        %v447 = vperm.slane %v445, 0
        %v449 = vadd.f32 %v442, %v447
        %vm450 = vcmp.gt.f32.partialorder %v449, 0.0
        %v451 = vmin.f32 %v449, 0.0
        %v452 = vmul.f32 %v451, 1.442695
        %v453 = vpow.pop %v452
        %v454 = vsub.f32 %v453, 1.0
        %v455 = vsel %vm450, %v449, %v454
        %v456 = vpack.c.bf16 %v455, %v455
        %v457 = vld [vmem:[#allocation8] sm:$0xf]
        %v458 = vld [vmem:[#allocation8 + $0x4] sm:$0xf]
        %v459 = vld [vmem:[#allocation8 + $0x8] sm:$0xf]
        %v460 = vld [vmem:[#allocation8 + $0xc] sm:$0xf]
        %v461 = vld [vmem:[#allocation8 + $0x10] sm:$0xf]
        %v462 = vld [vmem:[#allocation8 + $0x14] sm:$0xf]
        %v463 = vld [vmem:[#allocation8 + $0x18] sm:$0xf]
        %v464 = vld [vmem:[#allocation8 + $0x1c] sm:$0xf]
        %v465 = vld [vmem:[#allocation8 + $0x20] sm:$0xf]
        %v466 = vld [vmem:[#allocation8 + $0x24] sm:$0xf]
        %v467 = vld [vmem:[#allocation8 + $0x28] sm:$0xf]
        %v468 = vld [vmem:[#allocation8 + $0x2c] sm:$0xf]
        %v469 = vld [vmem:[#allocation8 + $0x30] sm:$0xf]
        %v470 = vld [vmem:[#allocation8 + $0x34] sm:$0xf]
        %v471 = vld [vmem:[#allocation8 + $0x38] sm:$0xf]
        %v472 = vld [vmem:[#allocation8 + $0x3c] sm:$0xf]
        %v473 = vperm.slane %v386, 1
        %v490 = vunpack.c.l.b16 %v457
        %v491 = vunpack.c.l.b16 %v458
        %v492 = vunpack.c.l.b16 %v459
        %v493 = vunpack.c.l.b16 %v460
        %v494 = vunpack.c.l.b16 %v461
        %v495 = vunpack.c.l.b16 %v462
        %v496 = vunpack.c.l.b16 %v463
        %v497 = vunpack.c.l.b16 %v464
        %v498 = vunpack.c.l.b16 %v465
        %v499 = vunpack.c.l.b16 %v466
        %v500 = vunpack.c.l.b16 %v467
        %v501 = vunpack.c.l.b16 %v468
        %v502 = vunpack.c.l.b16 %v469
        %v503 = vunpack.c.l.b16 %v470
        %v504 = vunpack.c.l.b16 %v471
        %v505 = vunpack.c.l.b16 %v472
        %v506 = vpack.c.b16 %v491, %v490
        %v507 = vpack.c.b16 %v493, %v492
        %v508 = vpack.c.b16 %v495, %v494
        %v509 = vpack.c.b16 %v497, %v496
        %v510 = vpack.c.b16 %v499, %v498
        %v511 = vpack.c.b16 %v501, %v500
        %v512 = vpack.c.b16 %v503, %v502
        %v513 = vpack.c.b16 %v505, %v504
        %522 = vmatpush.bf16.msra.mxu0 %v513
        %523 = vmatpush.bf16.msra.mxu0 %v512
        %524 = vmatpush.bf16.msra.mxu0 %v511
        %525 = vmatpush.bf16.msra.mxu0 %v510
        %526 = vmatpush.bf16.msra.mxu0 %v509
        %527 = vmatpush.bf16.msra.mxu0 %v508
        %528 = vmatpush.bf16.msra.mxu0 %v507
        %529 = vmatpush.bf16.msra.mxu0 %v506
        %530 = vmatmul.bf16.gmra.mxu0 %v456
        %v531 = vpop.f32.mrf.mxu0
        %v532 = vadd.f32 %v473, %v531
        %v533 = vpop.f32.mrf.mxu0
        %534 = vdwg.mxu0
        %v535 = vpack.c.bf16 %v532, %v532
        %v536 = vld [vmem:[#allocation10] sm:$0xff]
        %v537 = vld [vmem:[#allocation10 + $0x8] sm:$0xff]
        %v538 = vld [vmem:[#allocation10 + $0x10] sm:$0xff]
        %v539 = vld [vmem:[#allocation10 + $0x18] sm:$0xff]
        %v540 = vld [vmem:[#allocation10 + $0x20] sm:$0xff]
        %v541 = vld [vmem:[#allocation10 + $0x28] sm:$0xff]
        %v542 = vld [vmem:[#allocation10 + $0x30] sm:$0xff]
        %v543 = vld [vmem:[#allocation10 + $0x38] sm:$0xff]
        %v544 = vld [vmem:[#allocation10 + $0x40] sm:$0xff]
        %v545 = vld [vmem:[#allocation10 + $0x48] sm:$0xff]
        %v546 = vld [vmem:[#allocation10 + $0x50] sm:$0xff]
        %v547 = vld [vmem:[#allocation10 + $0x58] sm:$0xff]
        %v548 = vld [vmem:[#allocation10 + $0x60] sm:$0xff]
        %v549 = vld [vmem:[#allocation10 + $0x68] sm:$0xff]
        %v550 = vld [vmem:[#allocation10 + $0x70] sm:$0xff]
        %v551 = vld [vmem:[#allocation10 + $0x78] sm:$0xff]
        %v552 = vperm.slane %v386, 2
        %v553 = vperm.slane %v387, 2
        %v570 = vunpack.c.l.b16 %v536
        %v571 = vunpack.c.h.b16 %v536
        %v572 = vunpack.c.l.b16 %v537
        %v573 = vunpack.c.h.b16 %v537
        %v574 = vunpack.c.l.b16 %v538
        %v575 = vunpack.c.h.b16 %v538
        %v576 = vunpack.c.l.b16 %v539
        %v577 = vunpack.c.h.b16 %v539
        %v578 = vunpack.c.l.b16 %v540
        %v579 = vunpack.c.h.b16 %v540
        %v580 = vunpack.c.l.b16 %v541
        %v581 = vunpack.c.h.b16 %v541
        %v582 = vunpack.c.l.b16 %v542
        %v583 = vunpack.c.h.b16 %v542
        %v584 = vunpack.c.l.b16 %v543
        %v585 = vunpack.c.h.b16 %v543
        %v586 = vunpack.c.l.b16 %v544
        %v587 = vunpack.c.h.b16 %v544
        %v588 = vunpack.c.l.b16 %v545
        %v589 = vunpack.c.h.b16 %v545
        %v590 = vunpack.c.l.b16 %v546
        %v591 = vunpack.c.h.b16 %v546
        %v592 = vunpack.c.l.b16 %v547
        %v593 = vunpack.c.h.b16 %v547
        %v594 = vunpack.c.l.b16 %v548
        %v595 = vunpack.c.h.b16 %v548
        %v596 = vunpack.c.l.b16 %v549
        %v597 = vunpack.c.h.b16 %v549
        %v598 = vunpack.c.l.b16 %v550
        %v599 = vunpack.c.h.b16 %v550
        %v600 = vunpack.c.l.b16 %v551
        %v601 = vunpack.c.h.b16 %v551
        %v602 = vpack.c.b16 %v572, %v570
        %v603 = vpack.c.b16 %v573, %v571
        %v604 = vpack.c.b16 %v576, %v574
        %v605 = vpack.c.b16 %v577, %v575
        %v606 = vpack.c.b16 %v580, %v578
        %v607 = vpack.c.b16 %v581, %v579
        %v608 = vpack.c.b16 %v584, %v582
        %v609 = vpack.c.b16 %v585, %v583
        %v610 = vpack.c.b16 %v588, %v586
        %v611 = vpack.c.b16 %v589, %v587
        %v612 = vpack.c.b16 %v592, %v590
        %v613 = vpack.c.b16 %v593, %v591
        %v614 = vpack.c.b16 %v596, %v594
        %v615 = vpack.c.b16 %v597, %v595
        %v616 = vpack.c.b16 %v600, %v598
        %v617 = vpack.c.b16 %v601, %v599
        %634 = vmatpush.bf16.msra.mxu0 %v616
        %635 = vmatpush.bf16.msra.mxu0 %v614
        %636 = vmatpush.bf16.msra.mxu0 %v612
        %637 = vmatpush.bf16.msra.mxu0 %v610
        %638 = vmatpush.bf16.msra.mxu0 %v608
        %639 = vmatpush.bf16.msra.mxu0 %v606
        %640 = vmatpush.bf16.msra.mxu0 %v604
        %641 = vmatpush.bf16.msra.mxu0 %v602
        %642 = vmatmul.bf16.gmra.mxu0 %v535
        %v643 = vpop.f32.mrf.mxu0
        %v644 = vadd.f32 %v552, %v643
        %v645 = vpop.f32.mrf.mxu0
        %646 = vdwg.mxu0
        %647 = vmatpush.bf16.msra.mxu0 %v617
        %648 = vmatpush.bf16.msra.mxu0 %v615
        %649 = vmatpush.bf16.msra.mxu0 %v613
        %650 = vmatpush.bf16.msra.mxu0 %v611
        %651 = vmatpush.bf16.msra.mxu0 %v609
        %652 = vmatpush.bf16.msra.mxu0 %v607
        %653 = vmatpush.bf16.msra.mxu0 %v605
        %654 = vmatpush.bf16.msra.mxu0 %v603
        %655 = vmatmul.bf16.gmra.mxu0 %v535
        %v656 = vpop.f32.mrf.mxu0
        %v657 = vadd.f32 %v553, %v656
        %v658 = vpop.f32.mrf.mxu0
        %659 = vdwg.mxu0
        %v660 = vxor.u32 %v657, 2147483648
        %v661 = vmul.f32 %v660, 1.442695
        %v662 = vpow.pop %v661
        %v663 = vadd.f32 %v662, 1.0
        %v664 = vrcp.pop %v663
        %v665 = vmul.f32 %v663, %v664
        %v666 = vsub.f32 1.0, %v665
        %v667 = vmul.f32 %v664, %v666
        %v668 = vadd.f32 %v664, %v667
        %vm669 = vweird.f32 %v663
        %vm670 = vweird.f32 %v664
        %vm671 = vmor %vm669, %vm670
        %v672 = vsel %vm671, %v664, %v668
        %v673 = vand.u32 2147483647, %v663
        %vm674 = vcmp.eq.f32.partialorder %v673, 8.507059e+37
        %v675 = vand.u32 %v663, 2147483648
        %v676 = vor.u32 1.1754944e-38, %v675
        %v677 = vsel %vm674, %v676, %v672
        %v678 = vmul.f32 1.0, %v677
        %v679 = vmul.f32 %v678, %v644
        %v680 = vadd.f32 %v679, %v429
        %681 = vadd.xlane.f32.xlu0 %v680
        %v682 = vpop.xlane.xlu0 %681
        %v683 = vmul.f32 %v682, 0.03125
        %v684 = vmul.f32 %v680, %v680
        %685 = vadd.xlane.f32.xlu0 %v684
        %v686 = vpop.xlane.xlu0 %685
        %v687 = vmul.f32 %v686, 0.03125
        %v688 = vmul.f32 %v683, %v683
        %v689 = vsub.f32 %v687, %v688
        %v690 = vsub.f32 %v680, %v683
        %v691 = vadd.f32 %v689, 1e-05
        %v692 = vrsqrt.pop %v691
        %v693 = vmul.f32 %v692, %v691
        %v694 = vmul.f32 %v693, %v692
        %v695 = vmul.f32 0.5, %v694
        %v696 = vsub.f32 1.5, %v695
        %v697 = vmul.f32 %v692, %v696
        %vm698 = vweird.f32 %v691
        %vm699 = vweird.f32 %v692
        %vm700 = vmor %vm698, %vm699
        %v701 = vsel %vm700, %v692, %v697
        %v702 = vmul.f32 %v690, %v701
        %v703 = vperm.slane %v386, 3
        %v704 = vmul.f32 %v702, %v703
        %v705 = vperm.slane %v386, 4
        %v706 = vadd.f32 %v704, %v705
        %707 = vst [vmem:[%s384] sm:$0xff] %v706
        %s708 = sand.u32 %s188, 1
        %s709 = scalar_lea.sflag [#allocation4], %s708
        %s710 = sand.u32 %s188, 1
        %s711 = smul.addr %s710, 8
        %s712 = scalar_lea.vmem [#allocation13], %s711
        // Predicated region
        $region69: #{tpu_custom_call.1} parent=43 // pred_check
          %p713 = pneg %p198
        $region70: #{tpu_custom_call.1} parent=43 // pred_check_branch
          %715 = sbr.rel (%p713) target = $region72
        $region71: #{tpu_custom_call.1} parent=43 // pred_region
          %717 = vsyncadd %s709, 0
          %s718 = sadd.s32 %s33, %s32
          %s719 = smul.addr %s718, 8
          %s720 = scalar_lea.hbm %s6, %s719
          %s722 = sshll.u32 %s712, 4
          %s723 = int_to_ptr.vmem [resolvable:$true] %s722
          %s724 = sshll.u32 %s720, 4
          %s725 = int_to_ptr.hbm [resolvable:$true] %s724
          %727 = dma.vmem_to_hbm [thread:$0]  %s723, 128, %s725, %s709
        $region72: #{tpu_custom_call.1} parent=43 // pred_fallthru
          _
      $region44: #{tpu_custom_call.1} parent=5 // pred_fallthru
        _
      %p728 = scmp.le.s32.totalorder 2, %s23
      // Predicated region
      $region73: #{tpu_custom_call.1} parent=5 // pred_check
        %p729 = pneg %p728
      $region74: #{tpu_custom_call.1} parent=5 // pred_check_branch
        %731 = sbr.rel (%p729) target = $region76
      $region75: #{tpu_custom_call.1} parent=5 // pred_region
        %s732 = ssub.s32 %s23, 2
        // Predicated region
        $region77: #{tpu_custom_call.1} parent=75 // pred_check
          %p733 = pneg %p204
        $region78: #{tpu_custom_call.1} parent=75 // pred_check_branch
          %735 = sbr.rel (%p733) target = $region80
        $region79: #{tpu_custom_call.1} parent=75 // pred_region
          %s736 = sand.u32 %s189, 1
          %s737 = scalar_lea.sflag [#allocation4], %s736
          %s738 = sand.u32 %s189, 1
          %s739 = smul.addr %s738, 8
          %s740 = scalar_lea.vmem [#allocation13], %s739
          %742 = dma.done %s737, 128
        $region80: #{tpu_custom_call.1} parent=75 // pred_fallthru
          _
      $region76: #{tpu_custom_call.1} parent=5 // pred_fallthru
        _
    $region6: #{tpu_custom_call.1} parent=1 // loop_footer
      %s27 = sadd.s32 1, %s23
    $region7: #{tpu_custom_call.1} parent=1 // loop_footer_branch
      %22 = sbr.rel target = $region3
    $region8: #{tpu_custom_call.1} parent=1 // loop_exit
      _
    %743 = vsyncpa [#allocation3], 1
    %s744 = scalar_lea.sflag [#allocation3], 1
    %745 = vsyncpa %s744, 1
    %746 = vsyncpa [#allocation6], 1
    %s747 = scalar_lea.sflag [#allocation6], 1
    %748 = vsyncpa %s747, 1
    %749 = vsyncpa [#allocation9], 1
    %750 = vsyncpa [#allocation12], 1
    %751 = vsyncpa [#allocation4], 1
    %s752 = scalar_lea.sflag [#allocation4], 1
    %753 = vsyncpa %s752, 1

</llo_original>
